<compile_context>
chip_gen: v6e
topology: v6e:2x2x1
jax: 0.10.0
libtpu: 0.0.40
codegen_flags: <defaults>
</compile_context>

<pallas_src>
import functools

import jax
import jax.numpy as jnp
from jax import lax
from jax.experimental import pallas as pl
from jax.experimental.pallas import tpu as pltpu

_MIB = 1024 * 1024


# ------------------------------------------------------------------ kernels

def _in_channels_first_kernel(x_ref, g_ref, b_ref, o_ref, *, eps):
    # x_ref: (nb, C, tl)   g_ref / b_ref: (1, C, tl) or (1, C, 1)
    x = x_ref[...].astype(jnp.float32)
    u = jnp.mean(x, axis=1, keepdims=True)               # (nb, 1, tl)
    d = x - u                                            # x dead after this
    s = jnp.mean(d * d, axis=1, keepdims=True)           # biased variance
    inv = lax.rsqrt(s + eps)                             # EUP rsqrt, no divide
    g = g_ref[...].astype(jnp.float32)
    b = b_ref[...].astype(jnp.float32)
    o_ref[...] = (g * (d * inv) + b).astype(o_ref.dtype)


def _in_channels_last_kernel(x_ref, g_ref, b_ref, o_ref, *, eps):
    # x_ref: (nb, tl, C)   g_ref / b_ref: (1, 1, C)   (== layer_norm over C)
    x = x_ref[...].astype(jnp.float32)
    u = jnp.mean(x, axis=-1, keepdims=True)              # (nb, tl, 1)
    d = x - u
    s = jnp.mean(d * d, axis=-1, keepdims=True)
    inv = lax.rsqrt(s + eps)
    g = g_ref[...].astype(jnp.float32)
    b = b_ref[...].astype(jnp.float32)
    o_ref[...] = (g * (d * inv) + b).astype(o_ref.dtype)


# --------------------------------------------------------------- tiling

def _round_up(x, m):
    return ((x + m - 1) // m) * m


def _tpu_vmem_info():
    """Returns (vmem_capacity_bytes, prefer_multi_step) with safe fallbacks."""
    vmem_cap = 64 * _MIB                      # conservative default (v7x/TC)
    try:
        info = pltpu.get_tpu_info()
        vmem_cap = int(getattr(info, "vmem_capacity_bytes", vmem_cap))
    except Exception:
        pass
    # v7x exposes 64 MiB VMEM per TensorCore and has 2 TCs/chip; only there is
    # a >=2-step grid useful (dimension_semantics="parallel" shards it).
    prefer_multi_step = vmem_cap <= 64 * _MIB
    return vmem_cap, prefer_multi_step


def _pick_blocks(n, band, c, itemsize, band_granule, target_tile_bytes,
                 prefer_multi_step):
    """Pick (nb, tb): batch block and block along the non-reduced 'band' (L)
    dim.  The reduced channel dim C is always fully resident."""
    bytes_per_sample = c * band * itemsize
    bytes_per_band_unit = c * band_granule * itemsize

    if bytes_per_sample <= target_tile_bytes:
        tb = band                                              # full L
        nb = max(1, min(n, target_tile_bytes // max(1, bytes_per_sample)))
    else:
        nb = 1
        units = max(1, target_tile_bytes // max(1, bytes_per_band_unit))
        tb = min(units * band_granule, _round_up(band, band_granule))

    # On 2-TC chips make sure there are >=2 grid steps when each half is still
    # a reasonably large (>=512 KiB) tile; on 1-TC chips the grid is a serial
    # loop, so one big step is strictly better.
    steps = pl.cdiv(n, nb) * pl.cdiv(band, tb)
    if prefer_multi_step and steps < 2:
        if nb >= 2 and pl.cdiv(nb, 2) * bytes_per_sample >= 512 * 1024:
            nb = pl.cdiv(nb, 2)
        elif tb > band_granule:
            half = _round_up(pl.cdiv(tb, 2), band_granule)
            if half < tb and nb * c * half * itemsize >= 512 * 1024:
                tb = half
    return nb, tb


# ------------------------------------------------------------------ wrapper

def instance_norm_forward(x, weight, bias, *, eps=1e-5,
                          data_format='channels_last'):
    """Pallas forward matching InstanceNorm.forward for 3-D inputs."""
    if data_format not in ('channels_last', 'channels_first'):
        raise NotImplementedError(data_format)
    assert x.ndim == 3

    vmem_cap, prefer_multi_step = _tpu_vmem_info()
    # Mem-bound kernel: 2-4 MiB input tiles already reach ~85% of HBM roofline.
    target_tile_bytes = min(4 * _MIB, vmem_cap // 24)
    itemsize = x.dtype.itemsize

    if data_format == 'channels_first':
        n, c, l = x.shape
        assert weight.shape == (c,) and bias.shape == (c,)
        nb, tl = _pick_blocks(n, l, c, itemsize, 128, target_tile_bytes,
                              prefer_multi_step)
        kernel = functools.partial(_in_channels_first_kernel, eps=eps)
        # Lane-dense gamma/beta when cheap (pure VPU affine), else (1,C,1).
        aux_lanes = tl if c * tl * weight.dtype.itemsize <= _MIB else 1
        g = jnp.broadcast_to(weight.reshape(1, c, 1), (1, c, aux_lanes))
        b = jnp.broadcast_to(bias.reshape(1, c, 1), (1, c, aux_lanes))
        x_tile = (nb, c, tl)
        x_map = lambda i, j: (i, 0, j)
        aux_tile = (1, c, aux_lanes)
        grid = (pl.cdiv(n, nb), pl.cdiv(l, tl))
    else:
        n, l, c = x.shape
        assert weight.shape == (c,) and bias.shape == (c,)
        nb, tl = _pick_blocks(n, l, c, itemsize, 8, target_tile_bytes,
                              prefer_multi_step)
        kernel = functools.partial(_in_channels_last_kernel, eps=eps)
        # TODO(synk): when C < 128 and 128 % C == 0, fold k=128//C channel
        # groups into the lane dim (wrapper reshape) for unmasked full-lane
        # stores; with C a multiple of 128 the stores are already lane-dense.
        g = weight.reshape(1, 1, c)
        b = bias.reshape(1, 1, c)
        x_tile = (nb, tl, c)
        x_map = lambda i, j: (i, j, 0)
        aux_tile = (1, 1, c)
        grid = (pl.cdiv(n, nb), pl.cdiv(l, tl))

    aux_map = lambda i, j: (0, 0, 0)

    # Real pipeline footprint: double-buffered in + out, double-buffered
    # gamma/beta, plus ~2 full-tile f32 temporaries inside the kernel.
    tile_elems = x_tile[0] * x_tile[1] * x_tile[2]
    aux_bytes = (g.size * g.dtype.itemsize) + (b.size * b.dtype.itemsize)
    footprint = (4 * tile_elems * itemsize          # 2x in + 2x out buffers
                 + 2 * tile_elems * 4               # in-kernel f32 temps
                 + 2 * aux_bytes                    # gamma/beta, double-buffered
                 + 2 * _MIB)                        # slack
    vmem_limit = int(min(max(footprint, 16 * _MIB), vmem_cap * 3 // 4))

    grid_spec = pltpu.PrefetchScalarGridSpec(
        num_scalar_prefetch=0,
        grid=grid,
        in_specs=[
            pl.BlockSpec(x_tile, x_map),       # x block (nb samples, tl band)
            pl.BlockSpec(aux_tile, aux_map),   # gamma (constant block)
            pl.BlockSpec(aux_tile, aux_map),   # beta
        ],
        out_specs=pl.BlockSpec(x_tile, x_map),
    )

    return pl.pallas_call(
        kernel,
        out_shape=jax.ShapeDtypeStruct(x.shape, x.dtype),
        grid_spec=grid_spec,
        compiler_params=pltpu.CompilerParams(
            dimension_semantics=("parallel", "parallel"),
            vmem_limit_bytes=vmem_limit),
    )(x, g, b)


# ---------------------------------------------------------------- reference

def instance_norm_reference(x, weight, bias, *, eps=1e-5,
                            data_format='channels_last'):
    """Pure-JAX mirror of the PyTorch forward."""
    if data_format == 'channels_last':
        u = x.mean(axis=-1, keepdims=True)
        s = ((x - u) ** 2).mean(axis=-1, keepdims=True)
        xn = (x - u) / jnp.sqrt(s + eps)
        return weight * xn + bias
    u = x.mean(axis=1, keepdims=True)
    s = ((x - u) ** 2).mean(axis=1, keepdims=True)
    xn = (x - u) / jnp.sqrt(s + eps)
    return weight[:, None] * xn + bias[:, None]


# --------------------------------------------------------------------- main

if __name__ == "__main__":
    key = jax.random.PRNGKey(0)
    k1, k2, k3, k4, k5, k6 = jax.random.split(key, 6)

    # ---- channels_first: x is (N, C, L), normalize over C --------------
    N, C, L = 4, 8, 128
    x_cf = jax.random.normal(k1, (N, C, L), jnp.float32)
    w_cf = 1.0 + 0.1 * jax.random.normal(k2, (C,), jnp.float32)
    b_cf = 0.1 * jax.random.normal(k3, (C,), jnp.float32)

    out_cf = jax.block_until_ready(
        instance_norm_forward(x_cf, w_cf, b_cf, data_format='channels_first'))
    ref_cf = instance_norm_reference(x_cf, w_cf, b_cf,
                                     data_format='channels_first')
    assert out_cf.shape == x_cf.shape
    assert jnp.allclose(out_cf, ref_cf, atol=1e-4, rtol=1e-4), \
        "channels_first mismatch vs JAX reference"

    # ---- channels_last (default): layer_norm over trailing C -----------
    N2, L2, C2 = 4, 16, 128
    x_cl = jax.random.normal(k4, (N2, L2, C2), jnp.float32)
    w_cl = 1.0 + 0.1 * jax.random.normal(k5, (C2,), jnp.float32)
    b_cl = 0.1 * jax.random.normal(k6, (C2,), jnp.float32)

    out_cl = jax.block_until_ready(
        instance_norm_forward(x_cl, w_cl, b_cl, data_format='channels_last'))
    ref_cl = instance_norm_reference(x_cl, w_cl, b_cl,
                                     data_format='channels_last')
    assert out_cl.shape == x_cl.shape
    assert jnp.allclose(out_cl, ref_cl, atol=1e-4, rtol=1e-4), \
        "channels_last mismatch vs JAX reference"

    print("KERNEL_OK")
</pallas_src>

<mosaic_0001>
module attributes {stable_mosaic.version = 11 : i64} {
  func.func @_in_channels_first_kernel(%arg0: i32, %arg1: i32, %arg2: memref<4x8x128xf32, #tpu.memory_space<vmem>>, %arg3: memref<1x8x128xf32, #tpu.memory_space<vmem>>, %arg4: memref<1x8x128xf32, #tpu.memory_space<vmem>>, %arg5: memref<4x8x128xf32, #tpu.memory_space<vmem>>) attributes {dimension_semantics = [#tpu.dimension_semantics<parallel>, #tpu.dimension_semantics<parallel>], iteration_bounds = array<i64: 1, 1>, scalar_prefetch = 0 : i64, scratch_operands = 0 : i64, tpu.core_type = #tpu.core_type<tc>, window_params = [{transform_indices = @transform_0, window_bounds = array<i64: 4, 8, 128>}, {pipeline_mode = #tpu.pipeline_mode<synchronous>, transform_indices = @transform_1, window_bounds = array<i64: 1, 8, 128>}, {pipeline_mode = #tpu.pipeline_mode<synchronous>, transform_indices = @transform_2, window_bounds = array<i64: 1, 8, 128>}, {transform_indices = @transform_3, window_bounds = array<i64: 4, 8, 128>}]} {
    %c0 = arith.constant 0 : index
    %c0_0 = arith.constant 0 : index
    %c0_1 = arith.constant 0 : index
    %0 = vector.load %arg2[%c0, %c0_0, %c0_1] : memref<4x8x128xf32, #tpu.memory_space<vmem>>, vector<4x8x128xf32>
    %cst = arith.constant dense<0.000000e+00> : vector<4x128xf32>
    %1 = vector.multi_reduction <add>, %0, %cst [1] : vector<4x8x128xf32> to vector<4x128xf32>
    %2 = vector.shape_cast %1 : vector<4x128xf32> to vector<4x1x128xf32>
    %cst_2 = arith.constant 8.000000e+00 : f32
    %3 = vector.broadcast %cst_2 : f32 to vector<4x1x128xf32>
    %4 = arith.divf %2, %3 : vector<4x1x128xf32>
    %5 = vector.broadcast %4 : vector<4x1x128xf32> to vector<4x8x128xf32>
    %6 = arith.subf %0, %5 : vector<4x8x128xf32>
    %7 = arith.mulf %6, %6 : vector<4x8x128xf32>
    %cst_3 = arith.constant dense<0.000000e+00> : vector<4x128xf32>
    %8 = vector.multi_reduction <add>, %7, %cst_3 [1] : vector<4x8x128xf32> to vector<4x128xf32>
    %9 = vector.shape_cast %8 : vector<4x128xf32> to vector<4x1x128xf32>
    %cst_4 = arith.constant 8.000000e+00 : f32
    %10 = vector.broadcast %cst_4 : f32 to vector<4x1x128xf32>
    %11 = arith.divf %9, %10 : vector<4x1x128xf32>
    %cst_5 = arith.constant 9.99999974E-6 : f32
    %12 = vector.broadcast %cst_5 : f32 to vector<4x1x128xf32>
    %13 = arith.addf %11, %12 : vector<4x1x128xf32>
    %14 = math.rsqrt %13 : vector<4x1x128xf32>
    %c0_6 = arith.constant 0 : index
    %c0_7 = arith.constant 0 : index
    %c0_8 = arith.constant 0 : index
    %15 = vector.load %arg3[%c0_6, %c0_7, %c0_8] : memref<1x8x128xf32, #tpu.memory_space<vmem>>, vector<1x8x128xf32>
    %c0_9 = arith.constant 0 : index
    %c0_10 = arith.constant 0 : index
    %c0_11 = arith.constant 0 : index
    %16 = vector.load %arg4[%c0_9, %c0_10, %c0_11] : memref<1x8x128xf32, #tpu.memory_space<vmem>>, vector<1x8x128xf32>
    %17 = vector.broadcast %14 : vector<4x1x128xf32> to vector<4x8x128xf32>
    %18 = arith.mulf %6, %17 : vector<4x8x128xf32>
    %19 = vector.broadcast %15 : vector<1x8x128xf32> to vector<4x8x128xf32>
    %20 = arith.mulf %19, %18 : vector<4x8x128xf32>
    %21 = vector.broadcast %16 : vector<1x8x128xf32> to vector<4x8x128xf32>
    %22 = arith.addf %20, %21 : vector<4x8x128xf32>
    %c0_12 = arith.constant 0 : index
    %c0_13 = arith.constant 0 : index
    %c0_14 = arith.constant 0 : index
    %23 = vector.load %arg5[%c0_12, %c0_13, %c0_14] : memref<4x8x128xf32, #tpu.memory_space<vmem>>, vector<4x8x128xf32>
    tpu.vector_store %arg5[%c0_12, %c0_13, %c0_14], %22 {strides = array<i32>} : memref<4x8x128xf32, #tpu.memory_space<vmem>>, vector<4x8x128xf32>,
    return
  }
  func.func @transform_0(%arg0: i32, %arg1: i32) -> (i32, i32, i32) {
    %c0_i32 = arith.constant 0 : i32
    %c0_i32_0 = arith.constant 0 : i32
    return %arg0, %c0_i32, %arg1 : i32, i32, i32
  }
  func.func @transform_1(%arg0: i32, %arg1: i32) -> (i32, i32, i32) {
    %c0_i32 = arith.constant 0 : i32
    %c0_i32_0 = arith.constant 0 : i32
    %c0_i32_1 = arith.constant 0 : i32
    %c0_i32_2 = arith.constant 0 : i32
    return %c0_i32, %c0_i32_0, %c0_i32_1 : i32, i32, i32
  }
  func.func @transform_2(%arg0: i32, %arg1: i32) -> (i32, i32, i32) {
    %c0_i32 = arith.constant 0 : i32
    %c0_i32_0 = arith.constant 0 : i32
    %c0_i32_1 = arith.constant 0 : i32
    %c0_i32_2 = arith.constant 0 : i32
    return %c0_i32, %c0_i32_0, %c0_i32_1 : i32, i32, i32
  }
  func.func @transform_3(%arg0: i32, %arg1: i32) -> (i32, i32, i32) {
    %c0_i32 = arith.constant 0 : i32
    %c0_i32_0 = arith.constant 0 : i32
    return %arg0, %c0_i32, %arg1 : i32, i32, i32
  }
}

</mosaic_0001>

<llo_original>
// kernel: tpu_custom_call.1
$region0: #{tpu_custom_call.1}
  #allocation0 [shape = 'u32[]', space=smem, size = 0x4, offset = 0x4, fixed_abs, tag = 'smem constant byte address 0x4 - core index']
  #allocation1 [shape = 'u32[144,128]{1,0:T(1,128)}', space=vmem, size = 0x12000, scoped, tag = 'internal scratch']
  %s0 = inlined_call_operand.hbm [shape: f32[4,8,128], index: 0, kind: input, shape index: {}]
  %s1 = inlined_call_operand.hbm [shape: f32[1,8,128], index: 1, kind: input, shape index: {}]
  %s2 = inlined_call_operand.hbm [shape: f32[1,8,128], index: 2, kind: input, shape index: {}]
  %s3 = inlined_call_operand.hbm [shape: f32[4,8,128], index: 3, kind: output, shape index: {}]
  %s4 = sld [smem:[#allocation0]]
  $region34: #{tpu_custom_call.1} parent=0
    _
  %s6 = ssub.s32 1, %s4
  %s7 = scalar_select 0, %s6, %s4
  $region1: #{tpu_custom_call.1} parent=0
    #allocation2 [shape = 'u8[16384]{0}', space=vmem, size = 0x4000, scoped, tag = 'input window, operand 0, single buffered']
    #allocation3 [shape = 's32[1]{0}', space=sflag, size = 0x4, scoped, tag = 'scoped memory for tpu_custom_call.1']
    #allocation4 [shape = 's32[1]{0}', space=sflag, size = 0x4, scoped, tag = 'scoped memory for tpu_custom_call.1']
    #allocation5 [shape = 'u8[4096]{0}', space=vmem, size = 0x1000, scoped, tag = 'input window, operand 1, single buffered']
    #allocation6 [shape = 's32[1]{0}', space=sflag, size = 0x4, scoped, tag = 'scoped memory for tpu_custom_call.1']
    #allocation7 [shape = 'u8[4096]{0}', space=vmem, size = 0x1000, scoped, tag = 'input window, operand 2, single buffered']
    #allocation8 [shape = 'u8[16384]{0}', space=vmem, size = 0x4000, scoped, tag = 'output window, operand 0, single buffered']
    %8 = vsyncpa [#allocation3], 0
    %9 = vsyncpa [#allocation6], 0
    %10 = vsyncpa [#allocation4], 0
    // Predicated region
    $region2: #{tpu_custom_call.1} parent=1 // pred_check
      _
    $region3: #{tpu_custom_call.1} parent=1 // pred_check_branch
      %12 = sbr.rel (0) target = $region5
    $region4: #{tpu_custom_call.1} parent=1 // pred_region
      %s14 = ssub.s32 512, 512
      %15 = vsyncadd [#allocation3], %s14
      %s16 = sshll.u32 [#allocation2], 4
      %s17 = int_to_ptr.vmem [resolvable:$true] %s16
      %22 = dma.hbm_to_vmem [thread:$0]  %s0, 512, %s17, [#allocation3], 128, 128, 8
    $region5: #{tpu_custom_call.1} parent=1 // pred_fallthru
      _
    // Predicated region
    $region6: #{tpu_custom_call.1} parent=1 // pred_check
      _
    $region7: #{tpu_custom_call.1} parent=1 // pred_check_branch
      %24 = sbr.rel (0) target = $region9
    $region8: #{tpu_custom_call.1} parent=1 // pred_region
      %s26 = ssub.s32 128, 128
      %27 = vsyncadd [#allocation6], %s26
      %s29 = sshll.u32 [#allocation5], 4
      %s30 = int_to_ptr.vmem [resolvable:$true] %s29
      %32 = dma.hbm_to_vmem [thread:$0]  %s1, 128, %s30, [#allocation6]
    $region9: #{tpu_custom_call.1} parent=1 // pred_fallthru
      _
    // Predicated region
    $region10: #{tpu_custom_call.1} parent=1 // pred_check
      _
    $region11: #{tpu_custom_call.1} parent=1 // pred_check_branch
      %34 = sbr.rel (0) target = $region13
    $region12: #{tpu_custom_call.1} parent=1 // pred_region
      %s36 = ssub.s32 128, 128
      %37 = vsyncadd [#allocation6], %s36
      %s39 = sshll.u32 [#allocation7], 4
      %s40 = int_to_ptr.vmem [resolvable:$true] %s39
      %42 = dma.hbm_to_vmem [thread:$0]  %s2, 128, %s40, [#allocation6]
    $region13: #{tpu_custom_call.1} parent=1 // pred_fallthru
      _
    // Predicated region
    $region14: #{tpu_custom_call.1} parent=1 // pred_check
      _
    $region15: #{tpu_custom_call.1} parent=1 // pred_check_branch
      %44 = sbr.rel (0) target = $region17
    $region16: #{tpu_custom_call.1} parent=1 // pred_region
      %45 = dma.done [#allocation3], 512
    $region17: #{tpu_custom_call.1} parent=1 // pred_fallthru
      _
    // Predicated region
    $region18: #{tpu_custom_call.1} parent=1 // pred_check
      _
    $region19: #{tpu_custom_call.1} parent=1 // pred_check_branch
      %47 = sbr.rel (0) target = $region21
    $region20: #{tpu_custom_call.1} parent=1 // pred_region
      %48 = dma.done [#allocation6], 128
    $region21: #{tpu_custom_call.1} parent=1 // pred_fallthru
      _
    // Predicated region
    $region22: #{tpu_custom_call.1} parent=1 // pred_check
      _
    $region23: #{tpu_custom_call.1} parent=1 // pred_check_branch
      %50 = sbr.rel (0) target = $region25
    $region24: #{tpu_custom_call.1} parent=1 // pred_region
      %51 = dma.done [#allocation6], 128
    $region25: #{tpu_custom_call.1} parent=1 // pred_fallthru
      _
    %v52 = vld [vmem:[#allocation2] sm:$0xff]
    %v53 = vld [vmem:[#allocation2 + $0x8] sm:$0xff]
    %v54 = vld [vmem:[#allocation2 + $0x10] sm:$0xff]
    %v55 = vld [vmem:[#allocation2 + $0x18] sm:$0xff]
    %v56 = vrot.slane %v52, 4
    %v57 = vadd.f32 %v52, %v56
    %v58 = vrot.slane %v57, 2
    %v59 = vadd.f32 %v57, %v58
    %v60 = vrot.slane %v59, 1
    %v61 = vadd.f32 %v59, %v60
    %v62 = vrot.slane %v53, 4
    %v63 = vadd.f32 %v53, %v62
    %v64 = vrot.slane %v63, 2
    %v65 = vadd.f32 %v63, %v64
    %v66 = vrot.slane %v65, 1
    %v67 = vadd.f32 %v65, %v66
    %v68 = vrot.slane %v54, 4
    %v69 = vadd.f32 %v54, %v68
    %v70 = vrot.slane %v69, 2
    %v71 = vadd.f32 %v69, %v70
    %v72 = vrot.slane %v71, 1
    %v73 = vadd.f32 %v71, %v72
    %v74 = vrot.slane %v55, 4
    %v75 = vadd.f32 %v55, %v74
    %v76 = vrot.slane %v75, 2
    %v77 = vadd.f32 %v75, %v76
    %v78 = vrot.slane %v77, 1
    %v79 = vadd.f32 %v77, %v78
    %v80 = vrcp.pop 8.0
    %v81 = vmul.f32 %v61, %v80
    %v82 = vmul.f32 %v67, %v80
    %v83 = vmul.f32 %v73, %v80
    %v84 = vmul.f32 %v79, %v80
    %v85 = vsub.f32 %v52, %v81
    %v86 = vsub.f32 %v53, %v82
    %v87 = vsub.f32 %v54, %v83
    %v88 = vsub.f32 %v55, %v84
    %v89 = vmul.f32 %v85, %v85
    %v90 = vmul.f32 %v86, %v86
    %v91 = vmul.f32 %v87, %v87
    %v92 = vmul.f32 %v88, %v88
    %v93 = vrot.slane %v89, 4
    %v94 = vadd.f32 %v89, %v93
    %v95 = vrot.slane %v94, 2
    %v96 = vadd.f32 %v94, %v95
    %v97 = vrot.slane %v96, 1
    %v98 = vadd.f32 %v96, %v97
    %v99 = vrot.slane %v90, 4
    %v100 = vadd.f32 %v90, %v99
    %v101 = vrot.slane %v100, 2
    %v102 = vadd.f32 %v100, %v101
    %v103 = vrot.slane %v102, 1
    %v104 = vadd.f32 %v102, %v103
    %v105 = vrot.slane %v91, 4
    %v106 = vadd.f32 %v91, %v105
    %v107 = vrot.slane %v106, 2
    %v108 = vadd.f32 %v106, %v107
    %v109 = vrot.slane %v108, 1
    %v110 = vadd.f32 %v108, %v109
    %v111 = vrot.slane %v92, 4
    %v112 = vadd.f32 %v92, %v111
    %v113 = vrot.slane %v112, 2
    %v114 = vadd.f32 %v112, %v113
    %v115 = vrot.slane %v114, 1
    %v116 = vadd.f32 %v114, %v115
    %v117 = vmul.f32 %v98, %v80
    %v118 = vmul.f32 %v104, %v80
    %v119 = vmul.f32 %v110, %v80
    %v120 = vmul.f32 %v116, %v80
    %v121 = vadd.f32 %v117, 1e-05
    %v122 = vadd.f32 %v118, 1e-05
    %v123 = vadd.f32 %v119, 1e-05
    %v124 = vadd.f32 %v120, 1e-05
    %v125 = vrsqrt.pop %v121
    %v126 = vrsqrt.pop %v122
    %v127 = vrsqrt.pop %v123
    %v128 = vrsqrt.pop %v124
    %v129 = vld [vmem:[#allocation5] sm:$0xff]
    %v130 = vld [vmem:[#allocation7] sm:$0xff]
    %v131 = vmul.f32 %v85, %v125
    %v132 = vmul.f32 %v86, %v126
    %v133 = vmul.f32 %v87, %v127
    %v134 = vmul.f32 %v88, %v128
    %v135 = vmul.f32 %v129, %v131
    %v136 = vmul.f32 %v129, %v132
    %v137 = vmul.f32 %v129, %v133
    %v138 = vmul.f32 %v129, %v134
    %v139 = vadd.f32 %v135, %v130
    %v140 = vadd.f32 %v136, %v130
    %v141 = vadd.f32 %v137, %v130
    %v142 = vadd.f32 %v138, %v130
    %143 = vst [vmem:[#allocation8] sm:$0xff] %v139
    %144 = vst [vmem:[#allocation8 + $0x8] sm:$0xff] %v140
    %145 = vst [vmem:[#allocation8 + $0x10] sm:$0xff] %v141
    %146 = vst [vmem:[#allocation8 + $0x18] sm:$0xff] %v142
    // Predicated region
    $region26: #{tpu_custom_call.1} parent=1 // pred_check
      _
    $region27: #{tpu_custom_call.1} parent=1 // pred_check_branch
      %148 = sbr.rel (0) target = $region29
    $region28: #{tpu_custom_call.1} parent=1 // pred_region
      %s150 = ssub.s32 512, 512
      %151 = vsyncadd [#allocation4], %s150
      %s152 = sshll.u32 [#allocation8], 4
      %s153 = int_to_ptr.vmem [resolvable:$true] %s152
      %158 = dma.vmem_to_hbm [thread:$0]  %s153, 512, %s3, [#allocation4], 128, 128, 8
    $region29: #{tpu_custom_call.1} parent=1 // pred_fallthru
      _
    // Predicated region
    $region30: #{tpu_custom_call.1} parent=1 // pred_check
      _
    $region31: #{tpu_custom_call.1} parent=1 // pred_check_branch
      %160 = sbr.rel (0) target = $region33
    $region32: #{tpu_custom_call.1} parent=1 // pred_region
      %161 = dma.done [#allocation4], 512
    $region33: #{tpu_custom_call.1} parent=1 // pred_fallthru
      _
    %162 = vsyncpa [#allocation3], 1
    %163 = vsyncpa [#allocation6], 1
    %164 = vsyncpa [#allocation4], 1

</llo_original>
